<compile_context>
chip_gen: v6e
topology: v6e:2x2x1
jax: 0.10.0
libtpu: 0.0.40
codegen_flags: <defaults>
</compile_context>

<pallas_src>
import jax
import jax.numpy as jnp
from jax.experimental import pallas as pl
from jax.experimental.pallas import tpu as pltpu


def mlp_kernel(x_ref, w1b1_ref, w2_ref, b2_ref, w3_ref, b3_ref, o_ref):
    x = x_ref[...]                                             # (1, bm) lane-dense

    # Layer 1 (in=1, out=64) on the MXU, bias folded into the contraction:
    #   [W1 | b1] (64, 2)  @  [x ; 1] (2, bm)
    rhs1 = jnp.concatenate([x, jnp.ones_like(x)], axis=0)      # (2, bm)
    h1 = jnp.dot(w1b1_ref[...], rhs1, preferred_element_type=jnp.float32)
    h1 = jnp.maximum(h1, 0.0)                                  # (64, bm)

    # Layer 2 (in=64, out=32) on the MXU; bias add (32 rows) stays on the VPU.
    h2 = jnp.dot(w2_ref[...], h1, preferred_element_type=jnp.float32)
    h2 = jnp.maximum(h2 + b2_ref[...], 0.0)                    # (32, bm)

    # Layer 3 (in=32, out=1) on the MXU: (1,32) @ (32, bm).
    out = jnp.dot(w3_ref[...], h2, preferred_element_type=jnp.float32)
    o_ref[...] = (out + b3_ref[...]).astype(o_ref.dtype)       # (1, bm)


def _round_up(n, m):
    return -(-n // m) * m


def max_min_nn_forward(x, params, *, bm=4096):
    """x: (N, 1) float32. params in PyTorch orientation. Returns (N, 1) f32."""
    w1, b1, w2, b2, w3, b3 = params        # W: (out, in), b: (out,)
    N = x.shape[0]

    # Tile sizing: multiple of 128 lanes, no bigger than the padded batch, and
    # capped so the grid has >=2 parallel steps when possible (v7x megacore).
    n128 = _round_up(N, 128)
    bm = max(128, min(bm, n128))
    if n128 >= 256:
        bm = min(bm, _round_up(pl.cdiv(n128, 2), 128))
    n_pad = _round_up(N, bm)
    grid = (n_pad // bm,)

    # Lane-dense input: batch along lanes.
    x_t = x.reshape(1, N)
    if n_pad != N:
        x_t = jnp.pad(x_t, ((0, 0), (0, n_pad - N)))

    # Kernel-oriented parameter views (all tiny, resident across the grid).
    w1b1 = jnp.concatenate([w1, b1.reshape(64, 1)], axis=1)   # (64, 2)
    b2_c = b2.reshape(32, 1)                                  # (32, 1)
    w3_r = w3.reshape(1, 32)                                  # (1, 32) native orientation
    b3_c = b3.reshape(1, 1)                                   # (1, 1)

    def batch_map(i):
        return (0, i)

    def full_map(i):
        return (0, 0)

    out_t = pl.pallas_call(
        mlp_kernel,
        out_shape=jax.ShapeDtypeStruct((1, n_pad), jnp.float32),
        grid_spec=pltpu.PrefetchScalarGridSpec(
            num_scalar_prefetch=0,
            grid=grid,
            in_specs=[
                pl.BlockSpec((1, bm), batch_map),      # x tile     (1, bm)
                pl.BlockSpec(w1b1.shape, full_map),    # [W1 | b1]  (64, 2)
                pl.BlockSpec(w2.shape, full_map),      # W2         (32, 64)
                pl.BlockSpec(b2_c.shape, full_map),    # b2         (32, 1)
                pl.BlockSpec(w3_r.shape, full_map),    # W3         (1, 32)
                pl.BlockSpec(b3_c.shape, full_map),    # b3         (1, 1)
            ],
            out_specs=pl.BlockSpec((1, bm), batch_map),
        ),
        compiler_params=pltpu.CompilerParams(
            dimension_semantics=("parallel",),
        ),
    )(x_t, w1b1, w2, b2_c, w3_r, b3_c)

    if n_pad != N:
        out_t = out_t[:, :N]
    return out_t.reshape(N, 1)


def init_params(key):
    """Matches torch.nn.Linear default init: U(-1/sqrt(fan_in), 1/sqrt(fan_in)).

    Stored in PyTorch orientation: W (out, in), b (out,).
    """
    def linear(key, fan_in, fan_out):
        kw, kb = jax.random.split(key)
        bound = 1.0 / jnp.sqrt(fan_in)
        w = jax.random.uniform(kw, (fan_out, fan_in), jnp.float32, -bound, bound)
        b = jax.random.uniform(kb, (fan_out,), jnp.float32, -bound, bound)
        return w, b

    k1, k2, k3 = jax.random.split(key, 3)
    w1, b1 = linear(k1, 1, 64)
    w2, b2 = linear(k2, 64, 32)
    w3, b3 = linear(k3, 32, 1)
    return (w1, b1, w2, b2, w3, b3)


def reference_forward(x, params):
    w1, b1, w2, b2, w3, b3 = params
    h1 = jnp.maximum(x @ w1.T + b1, 0.0)
    h2 = jnp.maximum(h1 @ w2.T + b2, 0.0)
    return h2 @ w3.T + b3


if __name__ == "__main__":
    key = jax.random.PRNGKey(0)
    kp, kx = jax.random.split(key)

    params = init_params(kp)
    # Small batch of scalar inputs, shape (N, 1) like the PyTorch module expects.
    N = 256
    x = jax.random.normal(kx, (N, 1), jnp.float32)

    # bm cap logic yields two 128-wide lane-dense tiles here (>=2 grid steps
    # so both v7x TensorCores get work even at this small size).
    out = max_min_nn_forward(x, params)
    out = jax.block_until_ready(out)

    ref = reference_forward(x, params)
    assert out.shape == (N, 1)
    assert jnp.allclose(out, ref, atol=1e-4, rtol=1e-4), "mismatch vs reference"

    print("KERNEL_OK")
</pallas_src>

<mosaic_0001>
module attributes {stable_mosaic.version = 11 : i64} {
  func.func @mlp_kernel(%arg0: i32, %arg1: memref<1x128xf32, #tpu.memory_space<vmem>>, %arg2: memref<64x2xf32, #tpu.memory_space<vmem>>, %arg3: memref<32x64xf32, #tpu.memory_space<vmem>>, %arg4: memref<32x1xf32, #tpu.memory_space<vmem>>, %arg5: memref<1x32xf32, #tpu.memory_space<vmem>>, %arg6: memref<1x1xf32, #tpu.memory_space<vmem>>, %arg7: memref<1x128xf32, #tpu.memory_space<vmem>>) attributes {dimension_semantics = [#tpu.dimension_semantics<parallel>], iteration_bounds = array<i64: 2>, scalar_prefetch = 0 : i64, scratch_operands = 0 : i64, tpu.core_type = #tpu.core_type<tc>, window_params = [{transform_indices = @transform_0, window_bounds = array<i64: 1, 128>}, {pipeline_mode = #tpu.pipeline_mode<synchronous>, transform_indices = @transform_1, window_bounds = array<i64: 64, 2>}, {pipeline_mode = #tpu.pipeline_mode<synchronous>, transform_indices = @transform_2, window_bounds = array<i64: 32, 64>}, {pipeline_mode = #tpu.pipeline_mode<synchronous>, transform_indices = @transform_3, window_bounds = array<i64: 32, 1>}, {pipeline_mode = #tpu.pipeline_mode<synchronous>, transform_indices = @transform_4, window_bounds = array<i64: 1, 32>}, {pipeline_mode = #tpu.pipeline_mode<synchronous>, transform_indices = @transform_5, window_bounds = array<i64: 1, 1>}, {transform_indices = @transform_6, window_bounds = array<i64: 1, 128>}]} {
    %c0 = arith.constant 0 : index
    %c0_0 = arith.constant 0 : index
    %0 = vector.load %arg1[%c0, %c0_0] : memref<1x128xf32, #tpu.memory_space<vmem>>, vector<1x128xf32>
    %cst = arith.constant 1.000000e+00 : f32
    %1 = vector.broadcast %cst : f32 to vector<1x128xf32>
    %2 = tpu.concatenate %0, %1 in 0 : vector<1x128xf32>, vector<1x128xf32> -> vector<2x128xf32>
    %c0_1 = arith.constant 0 : index
    %c0_2 = arith.constant 0 : index
    %3 = vector.load %arg2[%c0_1, %c0_2] : memref<64x2xf32, #tpu.memory_space<vmem>>, vector<64x2xf32>
    %cst_3 = arith.constant dense<0.000000e+00> : vector<64x128xf32>
    %4 = tpu.matmul %3, %2, %cst_3 {dimension_numbers = #tpu.dot_dimension_numbers<[1], [0], [0], [1], [0, 0, 1, 1], [], []>} : vector<64x2xf32>, vector<2x128xf32>, vector<64x128xf32> -> vector<64x128xf32>
    %cst_4 = arith.constant 0.000000e+00 : f32
    %5 = vector.broadcast %cst_4 : f32 to vector<64x128xf32>
    %6 = arith.maximumf %4, %5 : vector<64x128xf32>
    %c0_5 = arith.constant 0 : index
    %c0_6 = arith.constant 0 : index
    %7 = vector.load %arg3[%c0_5, %c0_6] : memref<32x64xf32, #tpu.memory_space<vmem>>, vector<32x64xf32>
    %cst_7 = arith.constant dense<0.000000e+00> : vector<32x128xf32>
    %8 = tpu.matmul %7, %6, %cst_7 {dimension_numbers = #tpu.dot_dimension_numbers<[1], [0], [0], [1], [0, 0, 1, 1], [], []>} : vector<32x64xf32>, vector<64x128xf32>, vector<32x128xf32> -> vector<32x128xf32>
    %c0_8 = arith.constant 0 : index
    %c0_9 = arith.constant 0 : index
    %9 = vector.load %arg4[%c0_8, %c0_9] : memref<32x1xf32, #tpu.memory_space<vmem>>, vector<32x1xf32>
    %10 = vector.broadcast %9 : vector<32x1xf32> to vector<32x128xf32>
    %11 = arith.addf %8, %10 : vector<32x128xf32>
    %cst_10 = arith.constant 0.000000e+00 : f32
    %12 = vector.broadcast %cst_10 : f32 to vector<32x128xf32>
    %13 = arith.maximumf %11, %12 : vector<32x128xf32>
    %c0_11 = arith.constant 0 : index
    %c0_12 = arith.constant 0 : index
    %14 = vector.load %arg5[%c0_11, %c0_12] : memref<1x32xf32, #tpu.memory_space<vmem>>, vector<1x32xf32>
    %cst_13 = arith.constant dense<0.000000e+00> : vector<1x128xf32>
    %15 = tpu.matmul %14, %13, %cst_13 {dimension_numbers = #tpu.dot_dimension_numbers<[1], [0], [0], [1], [0, 0, 1, 1], [], []>} : vector<1x32xf32>, vector<32x128xf32>, vector<1x128xf32> -> vector<1x128xf32>
    %c0_14 = arith.constant 0 : index
    %c0_15 = arith.constant 0 : index
    %16 = vector.load %arg6[%c0_14, %c0_15] : memref<1x1xf32, #tpu.memory_space<vmem>>, vector<1x1xf32>
    %17 = vector.broadcast %16 : vector<1x1xf32> to vector<1x128xf32>
    %18 = arith.addf %15, %17 : vector<1x128xf32>
    %c0_16 = arith.constant 0 : index
    %c0_17 = arith.constant 0 : index
    %19 = vector.load %arg7[%c0_16, %c0_17] : memref<1x128xf32, #tpu.memory_space<vmem>>, vector<1x128xf32>
    tpu.vector_store %arg7[%c0_16, %c0_17], %18 {strides = array<i32>} : memref<1x128xf32, #tpu.memory_space<vmem>>, vector<1x128xf32>,
    return
  }
  func.func @transform_0(%arg0: i32) -> (i32, i32) {
    %c0_i32 = arith.constant 0 : i32
    %c0_i32_0 = arith.constant 0 : i32
    return %c0_i32, %arg0 : i32, i32
  }
  func.func @transform_1(%arg0: i32) -> (i32, i32) {
    %c0_i32 = arith.constant 0 : i32
    %c0_i32_0 = arith.constant 0 : i32
    %c0_i32_1 = arith.constant 0 : i32
    return %c0_i32, %c0_i32_0 : i32, i32
  }
  func.func @transform_2(%arg0: i32) -> (i32, i32) {
    %c0_i32 = arith.constant 0 : i32
    %c0_i32_0 = arith.constant 0 : i32
    %c0_i32_1 = arith.constant 0 : i32
    return %c0_i32, %c0_i32_0 : i32, i32
  }
  func.func @transform_3(%arg0: i32) -> (i32, i32) {
    %c0_i32 = arith.constant 0 : i32
    %c0_i32_0 = arith.constant 0 : i32
    %c0_i32_1 = arith.constant 0 : i32
    return %c0_i32, %c0_i32_0 : i32, i32
  }
  func.func @transform_4(%arg0: i32) -> (i32, i32) {
    %c0_i32 = arith.constant 0 : i32
    %c0_i32_0 = arith.constant 0 : i32
    %c0_i32_1 = arith.constant 0 : i32
    return %c0_i32, %c0_i32_0 : i32, i32
  }
  func.func @transform_5(%arg0: i32) -> (i32, i32) {
    %c0_i32 = arith.constant 0 : i32
    %c0_i32_0 = arith.constant 0 : i32
    %c0_i32_1 = arith.constant 0 : i32
    return %c0_i32, %c0_i32_0 : i32, i32
  }
  func.func @transform_6(%arg0: i32) -> (i32, i32) {
    %c0_i32 = arith.constant 0 : i32
    %c0_i32_0 = arith.constant 0 : i32
    return %c0_i32, %arg0 : i32, i32
  }
}

</mosaic_0001>

<llo_original>
// kernel: tpu_custom_call.1
$region0: #{tpu_custom_call.1}
  #allocation0 [shape = 'u32[]', space=smem, size = 0x4, offset = 0x4, fixed_abs, tag = 'smem constant byte address 0x4 - core index']
  #allocation1 [shape = 'u32[144,128]{1,0:T(1,128)}', space=vmem, size = 0x12000, scoped, tag = 'internal scratch']
  #allocation2 [shape = 'f32[1,1]{1,0:T(1,128)S(1)}', space=vmem, size = 0x200, scoped, tag = 'scoped memory for tpu_custom_call.1']
  %s0 = inlined_call_operand.vmem [shape: f32[1,256], index: 0, kind: input, shape index: {}]
  %s1 = inlined_call_operand.vmem [shape: f32[64,2], index: 1, kind: input, shape index: {}]
  %s2 = inlined_call_operand.vmem [shape: f32[32,64], index: 2, kind: input, shape index: {}]
  %s3 = inlined_call_operand.vmem [shape: f32[32,1], index: 3, kind: input, shape index: {}]
  %s4 = inlined_call_operand.vmem [shape: f32[1,32], index: 4, kind: input, shape index: {}]
  %s5 = inlined_call_operand.<no memory space> [shape: f32[1,1], index: 5, kind: input, shape index: {}]
  %s6 = inlined_call_operand.hbm [shape: f32[1,256], index: 6, kind: output, shape index: {}]
  %s7 = sld [smem:[#allocation0]]
  $region57: #{tpu_custom_call.1} parent=0
    _
  %s9 = ssub.s32 1, %s7
  %s10 = scalar_select 0, %s9, %s7
  %v11 = vstv %s5
  %12 = vst [vmem:[#allocation2] sm:$0x1] %v11
  $region1: #{tpu_custom_call.1} parent=0
    #allocation3 [shape = 'u8[1024]{0}', space=vmem, size = 0x400, scoped, tag = 'output window, operand 0']
    #allocation4 [shape = 's32[2]{0}', space=sflag, size = 0x8, scoped, tag = 'scoped memory for tpu_custom_call.1']
    %13 = vsyncpa [#allocation4], 0
    %s14 = scalar_lea.sflag [#allocation4], 1
    %15 = vsyncpa %s14, 0
    loop: start=0, step=1, limit=4
    $region2: #{tpu_custom_call.1} parent=1 // loop_pre_header
      _
    $region3: #{tpu_custom_call.1} parent=1 // loop_header
      %s17 = sphi 0, %s21
      %p18 = scmp.ge.s32.totalorder %s17, 4
      %s27 = sphi 0, %s29
      %s30 = sphi 0, %s27
      %s31 = sphi 0, %s30
      %s47 = sphi 0, %s31
      %s51 = sphi 0, %s51
      %s53 = sphi 0, %s51
      %s54 = sphi 0, %s53
      %s68 = sphi 0, %s54
      %s72 = sphi 0, %s72
      %s74 = sphi 0, %s72
      %s75 = sphi 0, %s74
      %s89 = sphi 0, %s75
      %s93 = sphi 0, %s93
      %s95 = sphi 0, %s93
      %s96 = sphi 0, %s95
      %s110 = sphi 0, %s96
      %s114 = sphi 0, %s114
      %s116 = sphi 0, %s114
      %s117 = sphi 0, %s116
      %s131 = sphi 0, %s117
      %s135 = sphi 0, %s135
      %s137 = sphi 0, %s135
      %s138 = sphi 0, %s137
      %s152 = sphi 0, %s138
      %s158 = sphi 0, %s160
      %s161 = sphi 0, %s158
      %s162 = sphi 0, %s161
      %s178 = sphi 0, %s162
    $region4: #{tpu_custom_call.1} parent=1 // loop_header_branch
      %20 = sbr.rel (%p18) target = $region8
    $region5: #{tpu_custom_call.1} parent=1 // loop_body
      %s22 = ssub.s32 %s17, 1
      %s23 = ssub.s32 %s17, 2
      %s24 = sadd.s32 %s17, 1
      %s25 = ssub.s32 %s17, %s24
      %p26 = scmp.eq.s32.totalorder %s25, 0
      %s28 = sadd.s32 %s27, 1
      %s29 = scalar_select %p26, %s27, %s28
      %p32 = pneg %p26
      %p33 = scmp.eq.s32.totalorder %s17, 1
      %p34 = por %p32, %p33
      %p35 = scmp.ne.s32.totalorder %s27, %s30
      %p36 = scmp.eq.s32.totalorder %s17, 0
      %p37 = por %p35, %p36
      %p38 = scmp.ne.s32.totalorder %s27, %s30
      %p39 = scmp.eq.s32.totalorder %s22, 1
      %p40 = por %p38, %p39
      %p41 = scmp.ne.s32.totalorder %s30, %s31
      %p42 = scmp.eq.s32.totalorder %s22, 0
      %p43 = por %p41, %p42
      %p44 = scmp.ne.s32.totalorder %s30, %s31
      %p45 = scmp.eq.s32.totalorder %s23, 1
      %p46 = por %p44, %p45
      %p48 = scmp.ne.s32.totalorder %s31, %s47
      %p49 = scmp.eq.s32.totalorder %s23, 0
      %p50 = por %p48, %p49
      %s52 = sadd.s32 %s51, 1
      %p55 = scmp.eq.s32.totalorder %s17, 1
      %p56 = scmp.ne.s32.totalorder %s51, %s53
      %p57 = scmp.eq.s32.totalorder %s17, 0
      %p58 = por %p56, %p57
      %p59 = scmp.ne.s32.totalorder %s51, %s53
      %p60 = scmp.eq.s32.totalorder %s22, 1
      %p61 = por %p59, %p60
      %p62 = scmp.ne.s32.totalorder %s53, %s54
      %p63 = scmp.eq.s32.totalorder %s22, 0
      %p64 = por %p62, %p63
      %p65 = scmp.ne.s32.totalorder %s53, %s54
      %p66 = scmp.eq.s32.totalorder %s23, 1
      %p67 = por %p65, %p66
      %p69 = scmp.ne.s32.totalorder %s54, %s68
      %p70 = scmp.eq.s32.totalorder %s23, 0
      %p71 = por %p69, %p70
      %s73 = sadd.s32 %s72, 1
      %p76 = scmp.eq.s32.totalorder %s17, 1
      %p77 = scmp.ne.s32.totalorder %s72, %s74
      %p78 = scmp.eq.s32.totalorder %s17, 0
      %p79 = por %p77, %p78
      %p80 = scmp.ne.s32.totalorder %s72, %s74
      %p81 = scmp.eq.s32.totalorder %s22, 1
      %p82 = por %p80, %p81
      %p83 = scmp.ne.s32.totalorder %s74, %s75
      %p84 = scmp.eq.s32.totalorder %s22, 0
      %p85 = por %p83, %p84
      %p86 = scmp.ne.s32.totalorder %s74, %s75
      %p87 = scmp.eq.s32.totalorder %s23, 1
      %p88 = por %p86, %p87
      %p90 = scmp.ne.s32.totalorder %s75, %s89
      %p91 = scmp.eq.s32.totalorder %s23, 0
      %p92 = por %p90, %p91
      %s94 = sadd.s32 %s93, 1
      %p97 = scmp.eq.s32.totalorder %s17, 1
      %p98 = scmp.ne.s32.totalorder %s93, %s95
      %p99 = scmp.eq.s32.totalorder %s17, 0
      %p100 = por %p98, %p99
      %p101 = scmp.ne.s32.totalorder %s93, %s95
      %p102 = scmp.eq.s32.totalorder %s22, 1
      %p103 = por %p101, %p102
      %p104 = scmp.ne.s32.totalorder %s95, %s96
      %p105 = scmp.eq.s32.totalorder %s22, 0
      %p106 = por %p104, %p105
      %p107 = scmp.ne.s32.totalorder %s95, %s96
      %p108 = scmp.eq.s32.totalorder %s23, 1
      %p109 = por %p107, %p108
      %p111 = scmp.ne.s32.totalorder %s96, %s110
      %p112 = scmp.eq.s32.totalorder %s23, 0
      %p113 = por %p111, %p112
      %s115 = sadd.s32 %s114, 1
      %p118 = scmp.eq.s32.totalorder %s17, 1
      %p119 = scmp.ne.s32.totalorder %s114, %s116
      %p120 = scmp.eq.s32.totalorder %s17, 0
      %p121 = por %p119, %p120
      %p122 = scmp.ne.s32.totalorder %s114, %s116
      %p123 = scmp.eq.s32.totalorder %s22, 1
      %p124 = por %p122, %p123
      %p125 = scmp.ne.s32.totalorder %s116, %s117
      %p126 = scmp.eq.s32.totalorder %s22, 0
      %p127 = por %p125, %p126
      %p128 = scmp.ne.s32.totalorder %s116, %s117
      %p129 = scmp.eq.s32.totalorder %s23, 1
      %p130 = por %p128, %p129
      %p132 = scmp.ne.s32.totalorder %s117, %s131
      %p133 = scmp.eq.s32.totalorder %s23, 0
      %p134 = por %p132, %p133
      %s136 = sadd.s32 %s135, 1
      %p139 = scmp.eq.s32.totalorder %s17, 1
      %p140 = scmp.ne.s32.totalorder %s135, %s137
      %p141 = scmp.eq.s32.totalorder %s17, 0
      %p142 = por %p140, %p141
      %p143 = scmp.ne.s32.totalorder %s135, %s137
      %p144 = scmp.eq.s32.totalorder %s22, 1
      %p145 = por %p143, %p144
      %p146 = scmp.ne.s32.totalorder %s137, %s138
      %p147 = scmp.eq.s32.totalorder %s22, 0
      %p148 = por %p146, %p147
      %p149 = scmp.ne.s32.totalorder %s137, %s138
      %p150 = scmp.eq.s32.totalorder %s23, 1
      %p151 = por %p149, %p150
      %p153 = scmp.ne.s32.totalorder %s138, %s152
      %p154 = scmp.eq.s32.totalorder %s23, 0
      %p155 = por %p153, %p154
      %s156 = ssub.s32 %s17, %s24
      %p157 = scmp.eq.s32.totalorder %s156, 0
      %s159 = sadd.s32 %s158, 1
      %s160 = scalar_select %p157, %s158, %s159
      %p163 = pneg %p157
      %p164 = scmp.eq.s32.totalorder %s17, 1
      %p165 = por %p163, %p164
      %p166 = scmp.ne.s32.totalorder %s158, %s161
      %p167 = scmp.eq.s32.totalorder %s17, 0
      %p168 = por %p166, %p167
      %p169 = scmp.ne.s32.totalorder %s158, %s161
      %p170 = scmp.eq.s32.totalorder %s22, 1
      %p171 = por %p169, %p170
      %p172 = scmp.ne.s32.totalorder %s161, %s162
      %p173 = scmp.eq.s32.totalorder %s22, 0
      %p174 = por %p172, %p173
      %p175 = scmp.ne.s32.totalorder %s161, %s162
      %p176 = scmp.eq.s32.totalorder %s23, 1
      %p177 = por %p175, %p176
      %p179 = scmp.ne.s32.totalorder %s162, %s178
      %p180 = scmp.eq.s32.totalorder %s23, 0
      %p181 = por %p179, %p180
      %p182 = scmp.le.s32.totalorder 1, %s17
      %p183 = scmp.lt.s32.totalorder %s17, 3
      %p184 = pnand %p182, %p183
      %p185 = pneg %p184
      // Predicated region
      $region9: #{tpu_custom_call.1} parent=5 // pred_check
        _
      $region10: #{tpu_custom_call.1} parent=5 // pred_check_branch
        %187 = sbr.rel (%p184) target = $region12
      $region11: #{tpu_custom_call.1} parent=5 // pred_region
        %s188 = ssub.s32 %s17, 1
        // Predicated region
        $region13: #{tpu_custom_call.1} parent=11 // pred_check
          %p189 = pneg %p64
        $region14: #{tpu_custom_call.1} parent=11 // pred_check_branch
          %191 = sbr.rel (%p189) target = $region16
        $region15: #{tpu_custom_call.1} parent=11 // pred_region
          _
        $region16: #{tpu_custom_call.1} parent=11 // pred_fallthru
          _
        // Predicated region
        $region17: #{tpu_custom_call.1} parent=11 // pred_check
          %p192 = pneg %p85
        $region18: #{tpu_custom_call.1} parent=11 // pred_check_branch
          %194 = sbr.rel (%p192) target = $region20
        $region19: #{tpu_custom_call.1} parent=11 // pred_region
          _
        $region20: #{tpu_custom_call.1} parent=11 // pred_fallthru
          _
        // Predicated region
        $region21: #{tpu_custom_call.1} parent=11 // pred_check
          %p195 = pneg %p106
        $region22: #{tpu_custom_call.1} parent=11 // pred_check_branch
          %197 = sbr.rel (%p195) target = $region24
        $region23: #{tpu_custom_call.1} parent=11 // pred_region
          _
        $region24: #{tpu_custom_call.1} parent=11 // pred_fallthru
          _
        // Predicated region
        $region25: #{tpu_custom_call.1} parent=11 // pred_check
          %p198 = pneg %p127
        $region26: #{tpu_custom_call.1} parent=11 // pred_check_branch
          %200 = sbr.rel (%p198) target = $region28
        $region27: #{tpu_custom_call.1} parent=11 // pred_region
          _
        $region28: #{tpu_custom_call.1} parent=11 // pred_fallthru
          _
        // Predicated region
        $region29: #{tpu_custom_call.1} parent=11 // pred_check
          %p201 = pneg %p148
        $region30: #{tpu_custom_call.1} parent=11 // pred_check_branch
          %203 = sbr.rel (%p201) target = $region32
        $region31: #{tpu_custom_call.1} parent=11 // pred_region
          _
        $region32: #{tpu_custom_call.1} parent=11 // pred_fallthru
          _
      $region12: #{tpu_custom_call.1} parent=5 // pred_fallthru
        _
      %p204 = scmp.lt.s32.totalorder %s17, 2
      // Predicated region
      $region33: #{tpu_custom_call.1} parent=5 // pred_check
        %p205 = pneg %p204
      $region34: #{tpu_custom_call.1} parent=5 // pred_check_branch
        %207 = sbr.rel (%p205) target = $region36
      $region35: #{tpu_custom_call.1} parent=5 // pred_region
        // Predicated region
        $region37: #{tpu_custom_call.1} parent=35 // pred_check
          %p208 = pneg %p37
        $region38: #{tpu_custom_call.1} parent=35 // pred_check_branch
          %210 = sbr.rel (%p208) target = $region40
        $region39: #{tpu_custom_call.1} parent=35 // pred_region
          %p211 = scmp.lt.s32.totalorder %s17, 1
          %s212 = scalar_select %p211, %s17, 1
          %s213 = scalar_lea.vmem %s0, %s212
        $region40: #{tpu_custom_call.1} parent=35 // pred_fallthru
          _
      $region36: #{tpu_custom_call.1} parent=5 // pred_fallthru
        _
      %p214 = scmp.le.s32.totalorder 1, %s17
      %p215 = scmp.lt.s32.totalorder %s17, 3
      %p216 = pnand %p214, %p215
      %p217 = pneg %p216
      // Predicated region
      $region41: #{tpu_custom_call.1} parent=5 // pred_check
        _
      $region42: #{tpu_custom_call.1} parent=5 // pred_check_branch
        %219 = sbr.rel (%p216) target = $region44
      $region43: #{tpu_custom_call.1} parent=5 // pred_region
        %s220 = ssub.s32 %s17, 1
        %p221 = scmp.lt.s32.totalorder %s22, 1
        %s222 = scalar_select %p221, %s22, 1
        %s223 = scalar_lea.vmem %s0, %s222
        %p224 = pneg %p43
        %p225 = pneg %p40
        %p226 = pneg %p64
        %p227 = pneg %p61
        %p228 = pneg %p85
        %p229 = pneg %p82
        %p230 = pneg %p106
        %p231 = pneg %p103
        %p232 = pneg %p127
        %p233 = pneg %p124
        %p234 = pneg %p148
        %p235 = pneg %p145
        %p236 = pneg %p174
        %p237 = pneg %p171
        %s238 = sand.u32 %s161, 1
        %s239 = scalar_lea.sflag [#allocation4], %s238
        %s240 = sand.u32 %s161, 1
        %s241 = scalar_lea.vmem [#allocation3], %s240
        %p242 = scmp.lt.s32.totalorder %s22, 1
        %s243 = scalar_select %p242, %s22, 1
        %s244 = scalar_lea.vmem %s0, %s243
        %v245 = vld [vmem:[%s244] sm:$0x1]
        %vm246 = vcmask 1040384
        %v247 = vsel %vm246, %v245, 1.0
        %v248 = vld [vmem:[%s1] sm:$0xff]
        %v249 = vld [vmem:[%s1 + $0x8] sm:$0xff]
        %v250 = vld [vmem:[%s1 + $0x10] sm:$0xff]
        %v251 = vld [vmem:[%s1 + $0x18] sm:$0xff]
        %v252 = vld [vmem:[%s1 + $0x20] sm:$0xff]
        %v253 = vld [vmem:[%s1 + $0x28] sm:$0xff]
        %v254 = vld [vmem:[%s1 + $0x30] sm:$0xff]
        %v255 = vld [vmem:[%s1 + $0x38] sm:$0xff]
        %vm256 = vcmask 15360
        %v258 = vsel %vm256, %v248, 0
        %v261 = vsel %vm256, %v249, 0
        %v264 = vsel %vm256, %v250, 0
        %v267 = vsel %vm256, %v251, 0
        %v270 = vsel %vm256, %v252, 0
        %v273 = vsel %vm256, %v253, 0
        %v276 = vsel %vm256, %v254, 0
        %v279 = vsel %vm256, %v255, 0
        %vm281 = vcmask 1041408
        %v283 = vsel %vm281, %v247, 0
        %285 = vmatprep.subr.mxu0 0.0
        %286 = vmatpush1.msra.mxu0 0.0
        %287 = vmatprep.subr.mxu0 0.0
        %288 = vmatpush1.msra.mxu0 0.0
        %289 = vmatprep.subr.mxu0 0.0
        %290 = vmatpush1.msra.mxu0 0.0
        %291 = vmatprep.subr.mxu0 0.0
        %292 = vmatpush1.msra.mxu0 0.0
        %293 = vmatprep.subr.mxu0 0.0
        %294 = vmatpush1.msra.mxu0 0.0
        %295 = vmatprep.subr.mxu0 0.0
        %296 = vmatpush1.msra.mxu0 0.0
        %297 = vmatprep.subr.mxu0 0.0
        %298 = vmatpush1.msra.mxu0 0.0
        %299 = vmatprep.subr.mxu0 0.0
        %300 = vmatpush1.msra.mxu0 0.0
        %301 = vmatprep.subr.mxu0 0.0
        %302 = vmatpush1.msra.mxu0 0.0
        %303 = vmatprep.subr.mxu0 0.0
        %304 = vmatpush1.msra.mxu0 0.0
        %305 = vmatprep.subr.mxu0 0.0
        %306 = vmatpush1.msra.mxu0 0.0
        %307 = vmatprep.subr.mxu0 0.0
        %308 = vmatpush1.msra.mxu0 0.0
        %309 = vmatprep.subr.mxu0 0.0
        %310 = vmatpush1.msra.mxu0 0.0
        %311 = vmatprep.subr.mxu0 0.0
        %312 = vmatpush1.msra.mxu0 0.0
        %313 = vmatprep.subr.mxu0 0.0
        %314 = vmatpush1.msra.mxu0 0.0
        %315 = vmatprep.subr.mxu0 0.0
        %316 = vmatpush1.msra.mxu0 %v283
        %317 = vmatprep.subr.mxu0 0.0
        %318 = vmatpush2.msra.mxu0 0.0
        %319 = vmatprep.subr.mxu0 0.0
        %320 = vmatpush2.msra.mxu0 0.0
        %321 = vmatprep.subr.mxu0 0.0
        %322 = vmatpush2.msra.mxu0 0.0
        %323 = vmatprep.subr.mxu0 0.0
        %324 = vmatpush2.msra.mxu0 0.0
        %325 = vmatprep.subr.mxu0 0.0
        %326 = vmatpush2.msra.mxu0 0.0
        %327 = vmatprep.subr.mxu0 0.0
        %328 = vmatpush2.msra.mxu0 0.0
        %329 = vmatprep.subr.mxu0 0.0
        %330 = vmatpush2.msra.mxu0 0.0
        %331 = vmatprep.subr.mxu0 0.0
        %332 = vmatpush2.msra.mxu0 0.0
        %333 = vmatprep.subr.mxu0 0.0
        %334 = vmatpush2.msra.mxu0 0.0
        %335 = vmatprep.subr.mxu0 0.0
        %336 = vmatpush2.msra.mxu0 0.0
        %337 = vmatprep.subr.mxu0 0.0
        %338 = vmatpush2.msra.mxu0 0.0
        %339 = vmatprep.subr.mxu0 0.0
        %340 = vmatpush2.msra.mxu0 0.0
        %341 = vmatprep.subr.mxu0 0.0
        %342 = vmatpush2.msra.mxu0 0.0
        %343 = vmatprep.subr.mxu0 0.0
        %344 = vmatpush2.msra.mxu0 0.0
        %345 = vmatprep.subr.mxu0 0.0
        %346 = vmatpush2.msra.mxu0 0.0
        %347 = vmatprep.subr.mxu0 0.0
        %348 = vmatpush2.msra.mxu0 0.0
        %349 = vmatprep.mubr.f32.mxu0 0.0
        %350 = vmatmul.mubr.f32.gmra.mxu0 %v258
        %v351 = vpop.f32.mrf.mxu0
        %v352 = vadd.f32 0.0, %v351
        %v353 = vpop.f32.mrf.mxu0
        %354 = vmatprep.mubr.f32.mxu0 0.0
        %355 = vmatmul.mubr.f32.gmra.mxu0 %v261
        %v356 = vpop.f32.mrf.mxu0
        %v357 = vadd.f32 0.0, %v356
        %v358 = vpop.f32.mrf.mxu0
        %359 = vmatprep.mubr.f32.mxu0 0.0
        %360 = vmatmul.mubr.f32.gmra.mxu0 %v264
        %v361 = vpop.f32.mrf.mxu0
        %v362 = vadd.f32 0.0, %v361
        %v363 = vpop.f32.mrf.mxu0
        %364 = vmatprep.mubr.f32.mxu0 0.0
        %365 = vmatmul.mubr.f32.gmra.mxu0 %v267
        %v366 = vpop.f32.mrf.mxu0
        %v367 = vadd.f32 0.0, %v366
        %v368 = vpop.f32.mrf.mxu0
        %369 = vmatprep.mubr.f32.mxu0 0.0
        %370 = vmatmul.mubr.f32.gmra.mxu0 %v270
        %v371 = vpop.f32.mrf.mxu0
        %v372 = vadd.f32 0.0, %v371
        %v373 = vpop.f32.mrf.mxu0
        %374 = vmatprep.mubr.f32.mxu0 0.0
        %375 = vmatmul.mubr.f32.gmra.mxu0 %v273
        %v376 = vpop.f32.mrf.mxu0
        %v377 = vadd.f32 0.0, %v376
        %v378 = vpop.f32.mrf.mxu0
        %379 = vmatprep.mubr.f32.mxu0 0.0
        %380 = vmatmul.mubr.f32.gmra.mxu0 %v276
        %v381 = vpop.f32.mrf.mxu0
        %v382 = vadd.f32 0.0, %v381
        %v383 = vpop.f32.mrf.mxu0
        %384 = vmatprep.mubr.f32.mxu0 0.0
        %385 = vmatmul.mubr.f32.gmra.mxu0 %v279
        %v386 = vpop.f32.mrf.mxu0
        %v387 = vadd.f32 0.0, %v386
        %v388 = vpop.f32.mrf.mxu0
        %389 = vdwg.mxu0
        %v390 = vmax.f32 %v352, 0.0
        %v391 = vmax.f32 %v357, 0.0
        %v392 = vmax.f32 %v362, 0.0
        %v393 = vmax.f32 %v367, 0.0
        %v394 = vmax.f32 %v372, 0.0
        %v395 = vmax.f32 %v377, 0.0
        %v396 = vmax.f32 %v382, 0.0
        %v397 = vmax.f32 %v387, 0.0
        %v398 = vld [vmem:[%s2] sm:$0xff]
        %v399 = vld [vmem:[%s2 + $0x8] sm:$0xff]
        %v400 = vld [vmem:[%s2 + $0x10] sm:$0xff]
        %v401 = vld [vmem:[%s2 + $0x18] sm:$0xff]
        %v402 = vld [vmem:[%s3] sm:$0xff]
        %v403 = vld [vmem:[%s3 + $0x8] sm:$0xff]
        %v404 = vld [vmem:[%s3 + $0x10] sm:$0xff]
        %v405 = vld [vmem:[%s3 + $0x18] sm:$0xff]
        %407 = vset.pattern.permute.xlu0 0
        %408 = vperm.xlu0 %407, %v402
        %v409 = vpop.permute.xlu0 %408
        %412 = vset.pattern.permute.xlu0 0
        %413 = vperm.xlu0 %412, %v403
        %v414 = vpop.permute.xlu0 %413
        %417 = vset.pattern.permute.xlu0 0
        %418 = vperm.xlu0 %417, %v404
        %v419 = vpop.permute.xlu0 %418
        %422 = vset.pattern.permute.xlu0 0
        %423 = vperm.xlu0 %422, %v405
        %v424 = vpop.permute.xlu0 %423
        %vm426 = vcmask 523264
        %v428 = vsel %vm426, %v398, 0
        %v431 = vsel %vm426, %v399, 0
        %v434 = vsel %vm426, %v400, 0
        %v437 = vsel %vm426, %v401, 0
        %439 = vmatprep.subr.mxu0 0.0
        %440 = vmatpush1.msra.mxu0 0.0
        %441 = vmatprep.subr.mxu0 0.0
        %442 = vmatpush1.msra.mxu0 0.0
        %443 = vmatprep.subr.mxu0 0.0
        %444 = vmatpush1.msra.mxu0 0.0
        %445 = vmatprep.subr.mxu0 0.0
        %446 = vmatpush1.msra.mxu0 0.0
        %447 = vmatprep.subr.mxu0 0.0
        %448 = vmatpush1.msra.mxu0 0.0
        %449 = vmatprep.subr.mxu0 0.0
        %450 = vmatpush1.msra.mxu0 0.0
        %451 = vmatprep.subr.mxu0 0.0
        %452 = vmatpush1.msra.mxu0 0.0
        %453 = vmatprep.subr.mxu0 0.0
        %454 = vmatpush1.msra.mxu0 0.0
        %455 = vmatprep.subr.mxu0 0.0
        %456 = vmatpush1.msra.mxu0 %v397
        %457 = vmatprep.subr.mxu0 0.0
        %458 = vmatpush1.msra.mxu0 %v396
        %459 = vmatprep.subr.mxu0 0.0
        %460 = vmatpush1.msra.mxu0 %v395
        %461 = vmatprep.subr.mxu0 0.0
        %462 = vmatpush1.msra.mxu0 %v394
        %463 = vmatprep.subr.mxu0 0.0
        %464 = vmatpush1.msra.mxu0 %v393
        %465 = vmatprep.subr.mxu0 0.0
        %466 = vmatpush1.msra.mxu0 %v392
        %467 = vmatprep.subr.mxu0 0.0
        %468 = vmatpush1.msra.mxu0 %v391
        %469 = vmatprep.subr.mxu0 0.0
        %470 = vmatpush1.msra.mxu0 %v390
        %471 = vmatprep.subr.mxu0 0.0
        %472 = vmatpush2.msra.mxu0 0.0
        %473 = vmatprep.subr.mxu0 0.0
        %474 = vmatpush2.msra.mxu0 0.0
        %475 = vmatprep.subr.mxu0 0.0
        %476 = vmatpush2.msra.mxu0 0.0
        %477 = vmatprep.subr.mxu0 0.0
        %478 = vmatpush2.msra.mxu0 0.0
        %479 = vmatprep.subr.mxu0 0.0
        %480 = vmatpush2.msra.mxu0 0.0
        %481 = vmatprep.subr.mxu0 0.0
        %482 = vmatpush2.msra.mxu0 0.0
        %483 = vmatprep.subr.mxu0 0.0
        %484 = vmatpush2.msra.mxu0 0.0
        %485 = vmatprep.subr.mxu0 0.0
        %486 = vmatpush2.msra.mxu0 0.0
        %487 = vmatprep.subr.mxu0 0.0
        %488 = vmatpush2.msra.mxu0 0.0
        %489 = vmatprep.subr.mxu0 0.0
        %490 = vmatpush2.msra.mxu0 0.0
        %491 = vmatprep.subr.mxu0 0.0
        %492 = vmatpush2.msra.mxu0 0.0
        %493 = vmatprep.subr.mxu0 0.0
        %494 = vmatpush2.msra.mxu0 0.0
        %495 = vmatprep.subr.mxu0 0.0
        %496 = vmatpush2.msra.mxu0 0.0
        %497 = vmatprep.subr.mxu0 0.0
        %498 = vmatpush2.msra.mxu0 0.0
        %499 = vmatprep.subr.mxu0 0.0
        %500 = vmatpush2.msra.mxu0 0.0
        %501 = vmatprep.subr.mxu0 0.0
        %502 = vmatpush2.msra.mxu0 0.0
        %503 = vmatprep.mubr.f32.mxu0 0.0
        %504 = vmatmul.mubr.f32.gmra.mxu0 %v428
        %v505 = vpop.f32.mrf.mxu0
        %v506 = vadd.f32 %v409, %v505
        %v507 = vpop.f32.mrf.mxu0
        %508 = vmatprep.mubr.f32.mxu0 0.0
        %509 = vmatmul.mubr.f32.gmra.mxu0 %v431
        %v510 = vpop.f32.mrf.mxu0
        %v511 = vadd.f32 %v414, %v510
        %v512 = vpop.f32.mrf.mxu0
        %513 = vmatprep.mubr.f32.mxu0 0.0
        %514 = vmatmul.mubr.f32.gmra.mxu0 %v434
        %v515 = vpop.f32.mrf.mxu0
        %v516 = vadd.f32 %v419, %v515
        %v517 = vpop.f32.mrf.mxu0
        %518 = vmatprep.mubr.f32.mxu0 0.0
        %519 = vmatmul.mubr.f32.gmra.mxu0 %v437
        %v520 = vpop.f32.mrf.mxu0
        %v521 = vadd.f32 %v424, %v520
        %v522 = vpop.f32.mrf.mxu0
        %523 = vdwg.mxu0
        %v524 = vmax.f32 %v506, 0.0
        %v525 = vmax.f32 %v511, 0.0
        %v526 = vmax.f32 %v516, 0.0
        %v527 = vmax.f32 %v521, 0.0
        %v528 = vld [vmem:[%s4] sm:$0x1]
        %v529 = vld [vmem:[#allocation2] sm:$0x1]
        %531 = vset.pattern.permute.xlu0 0
        %532 = vperm.xlu0 %531, %v529
        %v533 = vpop.permute.xlu0 %532
        %v535 = vlaneseq
        %v536 = vshrl.u32 %v535, 7
        %v537 = vsub.s32 0, %v536
        %v538 = vrot.slane %v533, %v537
        %vm539 = vcmask 261120
        %v541 = vsel %vm539, %v528, 0
        %543 = vmatprep.subr.mxu0 0.0
        %544 = vmatpush1.msra.mxu0 0.0
        %545 = vmatprep.subr.mxu0 0.0
        %546 = vmatpush1.msra.mxu0 0.0
        %547 = vmatprep.subr.mxu0 0.0
        %548 = vmatpush1.msra.mxu0 0.0
        %549 = vmatprep.subr.mxu0 0.0
        %550 = vmatpush1.msra.mxu0 0.0
        %551 = vmatprep.subr.mxu0 0.0
        %552 = vmatpush1.msra.mxu0 0.0
        %553 = vmatprep.subr.mxu0 0.0
        %554 = vmatpush1.msra.mxu0 0.0
        %555 = vmatprep.subr.mxu0 0.0
        %556 = vmatpush1.msra.mxu0 0.0
        %557 = vmatprep.subr.mxu0 0.0
        %558 = vmatpush1.msra.mxu0 0.0
        %559 = vmatprep.subr.mxu0 0.0
        %560 = vmatpush1.msra.mxu0 0.0
        %561 = vmatprep.subr.mxu0 0.0
        %562 = vmatpush1.msra.mxu0 0.0
        %563 = vmatprep.subr.mxu0 0.0
        %564 = vmatpush1.msra.mxu0 0.0
        %565 = vmatprep.subr.mxu0 0.0
        %566 = vmatpush1.msra.mxu0 0.0
        %567 = vmatprep.subr.mxu0 0.0
        %568 = vmatpush1.msra.mxu0 %v527
        %569 = vmatprep.subr.mxu0 0.0
        %570 = vmatpush1.msra.mxu0 %v526
        %571 = vmatprep.subr.mxu0 0.0
        %572 = vmatpush1.msra.mxu0 %v525
        %573 = vmatprep.subr.mxu0 0.0
        %574 = vmatpush1.msra.mxu0 %v524
        %575 = vmatprep.subr.mxu0 0.0
        %576 = vmatpush2.msra.mxu0 0.0
        %577 = vmatprep.subr.mxu0 0.0
        %578 = vmatpush2.msra.mxu0 0.0
        %579 = vmatprep.subr.mxu0 0.0
        %580 = vmatpush2.msra.mxu0 0.0
        %581 = vmatprep.subr.mxu0 0.0
        %582 = vmatpush2.msra.mxu0 0.0
        %583 = vmatprep.subr.mxu0 0.0
        %584 = vmatpush2.msra.mxu0 0.0
        %585 = vmatprep.subr.mxu0 0.0
        %586 = vmatpush2.msra.mxu0 0.0
        %587 = vmatprep.subr.mxu0 0.0
        %588 = vmatpush2.msra.mxu0 0.0
        %589 = vmatprep.subr.mxu0 0.0
        %590 = vmatpush2.msra.mxu0 0.0
        %591 = vmatprep.subr.mxu0 0.0
        %592 = vmatpush2.msra.mxu0 0.0
        %593 = vmatprep.subr.mxu0 0.0
        %594 = vmatpush2.msra.mxu0 0.0
        %595 = vmatprep.subr.mxu0 0.0
        %596 = vmatpush2.msra.mxu0 0.0
        %597 = vmatprep.subr.mxu0 0.0
        %598 = vmatpush2.msra.mxu0 0.0
        %599 = vmatprep.subr.mxu0 0.0
        %600 = vmatpush2.msra.mxu0 0.0
        %601 = vmatprep.subr.mxu0 0.0
        %602 = vmatpush2.msra.mxu0 0.0
        %603 = vmatprep.subr.mxu0 0.0
        %604 = vmatpush2.msra.mxu0 0.0
        %605 = vmatprep.subr.mxu0 0.0
        %606 = vmatpush2.msra.mxu0 0.0
        %607 = vmatprep.mubr.f32.mxu0 0.0
        %608 = vmatmul.mubr.f32.gmra.mxu0 %v541
        %v609 = vpop.f32.mrf.mxu0
        %v610 = vadd.f32 %v538, %v609
        %v611 = vpop.f32.mrf.mxu0
        %612 = vdwg.mxu0
        %613 = vst [vmem:[%s241] sm:$0x1] %v610
        %s614 = sand.u32 %s161, 1
        %s615 = scalar_lea.sflag [#allocation4], %s614
        %s616 = sand.u32 %s161, 1
        %s617 = scalar_lea.vmem [#allocation3], %s616
        // Predicated region
        $region45: #{tpu_custom_call.1} parent=43 // pred_check
          %p618 = pneg %p171
        $region46: #{tpu_custom_call.1} parent=43 // pred_check_branch
          %620 = sbr.rel (%p618) target = $region48
        $region47: #{tpu_custom_call.1} parent=43 // pred_region
          %s622 = ssub.s32 16, 16
          %623 = vsyncadd %s615, %s622
          %s624 = smul.addr %s22, 16
          %s625 = scalar_lea.hbm %s6, %s624
          %s627 = sshll.u32 %s617, 4
          %s628 = int_to_ptr.vmem [resolvable:$true] %s627
          %630 = dma.vmem_to_hbm [thread:$0]  %s628, 16, %s625, %s615
        $region48: #{tpu_custom_call.1} parent=43 // pred_fallthru
          _
      $region44: #{tpu_custom_call.1} parent=5 // pred_fallthru
        _
      %p631 = scmp.le.s32.totalorder 2, %s17
      // Predicated region
      $region49: #{tpu_custom_call.1} parent=5 // pred_check
        %p632 = pneg %p631
      $region50: #{tpu_custom_call.1} parent=5 // pred_check_branch
        %634 = sbr.rel (%p632) target = $region52
      $region51: #{tpu_custom_call.1} parent=5 // pred_region
        %s635 = ssub.s32 %s17, 2
        // Predicated region
        $region53: #{tpu_custom_call.1} parent=51 // pred_check
          %p636 = pneg %p177
        $region54: #{tpu_custom_call.1} parent=51 // pred_check_branch
          %638 = sbr.rel (%p636) target = $region56
        $region55: #{tpu_custom_call.1} parent=51 // pred_region
          %s639 = sand.u32 %s162, 1
          %s640 = scalar_lea.sflag [#allocation4], %s639
          %s641 = sand.u32 %s162, 1
          %s642 = scalar_lea.vmem [#allocation3], %s641
          %643 = dma.done %s640, 16
        $region56: #{tpu_custom_call.1} parent=51 // pred_fallthru
          _
      $region52: #{tpu_custom_call.1} parent=5 // pred_fallthru
        _
    $region6: #{tpu_custom_call.1} parent=1 // loop_footer
      %s21 = sadd.s32 1, %s17
    $region7: #{tpu_custom_call.1} parent=1 // loop_footer_branch
      %16 = sbr.rel target = $region3
    $region8: #{tpu_custom_call.1} parent=1 // loop_exit
      _
    %644 = vsyncpa [#allocation4], 1
    %s645 = scalar_lea.sflag [#allocation4], 1
    %646 = vsyncpa %s645, 1

</llo_original>
